<compile_context>
chip_gen: v7x
topology: tpu7x:2x2x1
jax: 0.10.0
libtpu: 0.0.40
codegen_flags: <defaults>
</compile_context>

<pallas_src>
import functools

import jax
import jax.numpy as jnp
from jax.experimental import pallas as pl
from jax.experimental.pallas import tpu as pltpu

LANE = 128  # TPU lane width; tiny feature dims are padded up to this.


def _vmem_cap_bytes():
    try:
        return int(getattr(pltpu.get_tpu_info(), "vmem_capacity_bytes",
                           64 * 1024 * 1024))
    except Exception:
        return 64 * 1024 * 1024


_VMEM_CAP = _vmem_cap_bytes()
_VMEM_LIMIT = int(min(_VMEM_CAP * 3 // 4, 100 * 1024 * 1024))
# Resident-A fusion threshold (conservative: leaves room for double-buffering
# and intermediates; ~12.8 MiB on v7x, ~25 MiB on v5e/v6e).
_FUSE_A_BYTES = _VMEM_CAP // 5


def _round_up(x, m):
    return (x + m - 1) // m * m


def _pick_tile(np_, target):
    """Largest multiple of 128 that divides np_ and is <= target (>=128)."""
    t = max(LANE, min(int(target), np_))
    t -= t % LANE
    while np_ % t:
        t -= LANE
    return t


def _pad2d(a, rows, cols, dtype):
    out = jnp.zeros((rows, cols), dtype)
    return out.at[: a.shape[0], : a.shape[1]].set(a.astype(dtype))


# ----------------------------- Pallas kernels ------------------------------ #
def _fused_resident_kernel(a_ref, x_ref, w1_ref, b1_ref, w2_ref, b2_ref, o_ref):
    """Small/medium graphs: A_hat resident in VMEM, both layers in one pass.

    out = A @ (relu((A @ x) @ W1 + b1) @ W2) + b2   (A read from HBM once).
    """
    ax = jnp.dot(a_ref[...], x_ref[...], preferred_element_type=jnp.float32)
    h = jnp.dot(ax, w1_ref[...], preferred_element_type=jnp.float32) + b1_ref[...]
    h = jnp.maximum(h, 0.0)          # fused ReLU; dropout(p=0.5) eval == identity
    z = jnp.dot(h, w2_ref[...], preferred_element_type=jnp.float32)
    out = jnp.dot(a_ref[...], z.astype(jnp.bfloat16),
                  preferred_element_type=jnp.float32) + b2_ref[...]
    o_ref[...] = out.astype(o_ref.dtype)


def _layer1_kernel(a_ref, x_ref, w1_ref, b1_ref, w2_ref, z_ref, acc_ref):
    """acc += A_tile @ x_chunk; finalize: z = relu(acc @ W1 + b1) @ W2.

    x is VMEM-resident (full array, constant block index); the k-th reduction
    chunk is sliced in-kernel so x is NOT re-streamed per row tile.
    """
    k = pl.program_id(1)
    tk = a_ref.shape[1]

    @pl.when(k == 0)
    def _():
        acc_ref[...] = jnp.zeros_like(acc_ref)

    off = pl.multiple_of(k * tk, tk)
    x_blk = x_ref[pl.ds(off, tk), :]
    acc_ref[...] += jnp.dot(a_ref[...], x_blk,
                            preferred_element_type=jnp.float32)

    @pl.when(k == pl.num_programs(1) - 1)
    def _():
        # conv1 feature transform + bias + fused ReLU (small f32 epilogue).
        h = jnp.dot(acc_ref[...], w1_ref[...],
                    preferred_element_type=jnp.float32) + b1_ref[...]
        h = jnp.maximum(h, 0.0)
        # dropout(p=0.5) in eval mode is the identity.
        # conv2 feature transform hoisted here (bias added after aggregation).
        z = jnp.dot(h, w2_ref[...], preferred_element_type=jnp.float32)
        z_ref[...] = z.astype(z_ref.dtype)


def _layer2_kernel(a_ref, z_ref, b2_ref, o_ref):
    """out = A_hat @ z + b2, accumulated directly into the resident f32 output.

    z is VMEM-resident (full array, constant block index); no extra scratch.
    """
    k = pl.program_id(1)
    tk = a_ref.shape[1]

    @pl.when(k == 0)
    def _():
        o_ref[...] = jnp.broadcast_to(b2_ref[...], o_ref.shape).astype(o_ref.dtype)

    off = pl.multiple_of(k * tk, tk)
    z_blk = z_ref[pl.ds(off, tk), :]
    o_ref[...] += jnp.dot(a_ref[...], z_blk,
                          preferred_element_type=jnp.float32)


# ----------------------------- Pallas wrappers ----------------------------- #
def _gcn_fused(a_hat, x, w1, b1, w2, b2):
    np_, fp = x.shape
    hp = w1.shape[1]
    cp = w2.shape[1]
    return pl.pallas_call(
        _fused_resident_kernel,
        out_shape=jax.ShapeDtypeStruct((np_, cp), jnp.float32),
        grid=(1,),
        in_specs=[
            pl.BlockSpec((np_, np_), lambda i: (0, 0)),   # A_hat, resident
            pl.BlockSpec((np_, fp), lambda i: (0, 0)),    # x, resident
            pl.BlockSpec((fp, hp), lambda i: (0, 0)),     # W1
            pl.BlockSpec((1, hp), lambda i: (0, 0)),      # b1
            pl.BlockSpec((hp, cp), lambda i: (0, 0)),     # W2
            pl.BlockSpec((1, cp), lambda i: (0, 0)),      # b2
        ],
        out_specs=pl.BlockSpec((np_, cp), lambda i: (0, 0)),
        compiler_params=pltpu.CompilerParams(
            dimension_semantics=("arbitrary",),
            vmem_limit_bytes=_VMEM_LIMIT,
        ),
    )(a_hat, x, w1, b1, w2, b2)


def _gcn_tiled(a_hat, x, w1, b1, w2, b2, tm, tk):
    np_, fp = x.shape
    hp = w1.shape[1]
    cp = w2.shape[1]
    grid = (np_ // tm, np_ // tk)
    cparams = pltpu.CompilerParams(
        dimension_semantics=("parallel", "arbitrary"),
        vmem_limit_bytes=_VMEM_LIMIT,
    )

    # Layer 1 (+ hoisted layer-2 feature transform): z = relu((A@x) @ W1 + b1) @ W2
    z = pl.pallas_call(
        _layer1_kernel,
        out_shape=jax.ShapeDtypeStruct((np_, cp), jnp.bfloat16),
        grid=grid,
        in_specs=[
            pl.BlockSpec((tm, tk), lambda i, k: (i, k)),   # A_hat tile (stream)
            pl.BlockSpec((np_, fp), lambda i, k: (0, 0)),  # x, resident full panel
            pl.BlockSpec((fp, hp), lambda i, k: (0, 0)),   # W1
            pl.BlockSpec((1, hp), lambda i, k: (0, 0)),    # b1
            pl.BlockSpec((hp, cp), lambda i, k: (0, 0)),   # W2
        ],
        out_specs=pl.BlockSpec((tm, cp), lambda i, k: (i, 0)),
        scratch_shapes=[pltpu.VMEM((tm, fp), jnp.float32)],
        compiler_params=cparams,
    )(a_hat, x, w1, b1, w2)

    # Layer 2 aggregation: out = A_hat @ z + b2 (accumulate into output block).
    out = pl.pallas_call(
        _layer2_kernel,
        out_shape=jax.ShapeDtypeStruct((np_, cp), jnp.float32),
        grid=grid,
        in_specs=[
            pl.BlockSpec((tm, tk), lambda i, k: (i, k)),   # A_hat tile (stream)
            pl.BlockSpec((np_, cp), lambda i, k: (0, 0)),  # z, resident full panel
            pl.BlockSpec((1, cp), lambda i, k: (0, 0)),    # b2
        ],
        out_specs=pl.BlockSpec((tm, cp), lambda i, k: (i, 0)),
        compiler_params=cparams,
    )(a_hat, z, b2)
    return out


# -------------------------------- JAX glue --------------------------------- #
def build_norm_adj_padded(edge_index, num_nodes, np_):
    """Dense D^{-1/2}(A+I)D^{-1/2} matching PyG gcn_norm / add_remaining_self_loops,
    built directly into the (np_, np_) padded buffer and cast once to bf16."""
    src = edge_index[0].astype(jnp.int32)
    dst = edge_index[1].astype(jnp.int32)
    ones = jnp.ones(src.shape, jnp.float32)

    # add_remaining_self_loops: add (i, i) only for nodes with NO explicit self-loop.
    existing_loops = jnp.zeros((num_nodes,), jnp.float32).at[src].add(
        jnp.where(src == dst, 1.0, 0.0))
    needs_loop = (existing_loops == 0.0).astype(jnp.float32)

    deg = jnp.zeros((num_nodes,), jnp.float32).at[dst].add(ones) + needs_loop
    dinv = jnp.where(deg > 0.0, jax.lax.rsqrt(deg), 0.0)

    norm = dinv[src] * dinv[dst]
    a = jnp.zeros((np_, np_), jnp.float32)
    a = a.at[dst, src].add(norm)                         # message j -> i lands at A[i, j]
    idx = jnp.arange(num_nodes)
    a = a.at[idx, idx].add(needs_loop * dinv * dinv)     # remaining self-loops
    return a.astype(jnp.bfloat16)
    # TODO(synk): for realistic sparse graphs, replace this dense A_hat with a
    # block-sparse / scalar-prefetch formulation that skips all-zero tiles.


def init_params(key, num_features, hidden_channels, num_classes):
    """Deterministic Glorot-uniform weights, zero biases (PyG GCNConv defaults)."""
    k1, k2 = jax.random.split(key)

    def glorot(k, fan_in, fan_out):
        limit = jnp.sqrt(6.0 / (fan_in + fan_out))
        return jax.random.uniform(
            k, (fan_in, fan_out), jnp.float32, minval=-limit, maxval=limit
        )

    return {
        "w1": glorot(k1, num_features, hidden_channels),
        "b1": jnp.zeros((1, hidden_channels), jnp.float32),
        "w2": glorot(k2, hidden_channels, num_classes),
        "b2": jnp.zeros((1, num_classes), jnp.float32),
    }


def gcn_forward(x, edge_index, params, *, force_tiled=False, tile_m=None, tile_k=None):
    n, f = x.shape
    h_dim = params["w1"].shape[1]
    c = params["w2"].shape[1]

    # Node axis padded only to a multiple of the lane width (caps quadratic
    # padding waste); feature axes padded to lane-dense 128.
    np_ = _round_up(n, LANE)
    fp = _round_up(f, LANE)
    hp = _round_up(h_dim, LANE)
    cp = _round_up(c, LANE)

    # Built directly in padded form (one N^2 materialization + one cast).
    # TODO(synk): precompute/cache this when edge_index is static across calls.
    a_hat_p = build_norm_adj_padded(edge_index, n, np_)

    x_p = _pad2d(x, np_, fp, jnp.bfloat16)              # bf16: halves N^2-adjacent traffic
    w1_p = _pad2d(params["w1"], fp, hp, jnp.float32)    # tiny weights: keep f32
    b1_p = _pad2d(params["b1"], 1, hp, jnp.float32)
    w2_p = _pad2d(params["w2"], hp, cp, jnp.float32)
    b2_p = _pad2d(params["b2"], 1, cp, jnp.float32)

    a_bytes = np_ * np_ * 2
    if (not force_tiled) and a_bytes <= _FUSE_A_BYTES:
        out_p = _gcn_fused(a_hat_p, x_p, w1_p, b1_p, w2_p, b2_p)
    else:
        if tile_m is None:
            tile_m = _pick_tile(np_, min(512, max(LANE, np_ // 2)))  # keep >=2 row tiles (v7x)
        if tile_k is None:
            tile_k = _pick_tile(np_, 2048)
        out_p = _gcn_tiled(a_hat_p, x_p, w1_p, b1_p, w2_p, b2_p, tile_m, tile_k)
    return out_p[:n, :c]


# ---------------------------------- main ----------------------------------- #
if __name__ == "__main__":
    num_features = 8
    hidden_channels = 32
    num_classes = 4

    key = jax.random.PRNGKey(0)
    k_x, k_e, k_p, k_x2, k_e2 = jax.random.split(key, 5)
    params = init_params(k_p, num_features, hidden_channels, num_classes)

    # --- Small graph (module's nominal shapes): fused resident-A path. ---
    num_nodes, num_edges = 16, 24
    x = jax.random.normal(k_x, (num_nodes, num_features), jnp.float32)
    edge_index = jax.random.randint(
        k_e, (2, num_edges), minval=0, maxval=num_nodes, dtype=jnp.int32)

    out = jax.block_until_ready(jax.jit(gcn_forward)(x, edge_index, params))
    assert out.shape == (num_nodes, num_classes)
    assert out.dtype == jnp.float32
    assert bool(jnp.all(jnp.isfinite(out)))

    # --- Slightly larger graph: exercise the tiled streaming path (used for
    #     big graphs) with a (2, 2) grid and check it matches the fused path. ---
    n2, e2 = 200, 400
    x2 = jax.random.normal(k_x2, (n2, num_features), jnp.float32)
    edge_index2 = jax.random.randint(
        k_e2, (2, e2), minval=0, maxval=n2, dtype=jnp.int32)

    out_fused = jax.block_until_ready(jax.jit(gcn_forward)(x2, edge_index2, params))
    tiled_fn = jax.jit(functools.partial(gcn_forward, force_tiled=True,
                                         tile_m=128, tile_k=128))
    out_tiled = jax.block_until_ready(tiled_fn(x2, edge_index2, params))
    assert out_tiled.shape == (n2, num_classes)
    assert bool(jnp.all(jnp.isfinite(out_tiled)))
    assert bool(jnp.allclose(out_fused, out_tiled, rtol=5e-3, atol=5e-3)), \
        "fused and tiled paths disagree"

    print("KERNEL_OK")
</pallas_src>

<mosaic_0001>
module attributes {stable_mosaic.version = 11 : i64} {
  func.func private @main(%arg0: i32) attributes {dimension_semantics = [#tpu.dimension_semantics<core_parallel>], iteration_bounds = array<i64: 2>, tpu.core_type = #tpu.core_type<sc_scalar_subcore>, window_params = []} {
    return
  }
}

module attributes {stable_mosaic.version = 11 : i64} {
  func.func private @main(%arg0: i32) attributes {dimension_semantics = [#tpu.dimension_semantics<core_parallel>], iteration_bounds = array<i64: 2>, tpu.core_type = #tpu.core_type<sc_scalar_subcore>, window_params = []} {
    return
  }
}

module attributes {stable_mosaic.version = 11 : i64} {
  func.func @_fused_resident_kernel(%arg0: i32, %arg1: memref<128x128xbf16, #tpu.memory_space<vmem>>, %arg2: memref<128x128xbf16, #tpu.memory_space<vmem>>, %arg3: memref<128x128xf32, #tpu.memory_space<vmem>>, %arg4: memref<1x128xf32, #tpu.memory_space<vmem>>, %arg5: memref<128x128xf32, #tpu.memory_space<vmem>>, %arg6: memref<1x128xf32, #tpu.memory_space<vmem>>, %arg7: memref<128x128xf32, #tpu.memory_space<vmem>>) attributes {dimension_semantics = [#tpu.dimension_semantics<arbitrary>], iteration_bounds = array<i64: 1>, scalar_prefetch = 0 : i64, scratch_operands = 0 : i64, tpu.core_type = #tpu.core_type<tc>, window_params = [{pipeline_mode = #tpu.pipeline_mode<synchronous>, transform_indices = @transform_0, window_bounds = array<i64: 128, 128>}, {pipeline_mode = #tpu.pipeline_mode<synchronous>, transform_indices = @transform_1, window_bounds = array<i64: 128, 128>}, {pipeline_mode = #tpu.pipeline_mode<synchronous>, transform_indices = @transform_2, window_bounds = array<i64: 128, 128>}, {pipeline_mode = #tpu.pipeline_mode<synchronous>, transform_indices = @transform_3, window_bounds = array<i64: 1, 128>}, {pipeline_mode = #tpu.pipeline_mode<synchronous>, transform_indices = @transform_4, window_bounds = array<i64: 128, 128>}, {pipeline_mode = #tpu.pipeline_mode<synchronous>, transform_indices = @transform_5, window_bounds = array<i64: 1, 128>}, {pipeline_mode = #tpu.pipeline_mode<synchronous>, transform_indices = @transform_6, window_bounds = array<i64: 128, 128>}]} {
    %c0 = arith.constant 0 : index
    %c0_0 = arith.constant 0 : index
    %0 = vector.load %arg1[%c0, %c0_0] : memref<128x128xbf16, #tpu.memory_space<vmem>>, vector<128x128xbf16>
    %c0_1 = arith.constant 0 : index
    %c0_2 = arith.constant 0 : index
    %1 = vector.load %arg2[%c0_1, %c0_2] : memref<128x128xbf16, #tpu.memory_space<vmem>>, vector<128x128xbf16>
    %cst = arith.constant dense<0.000000e+00> : vector<128x128xf32>
    %2 = tpu.matmul %0, %1, %cst {dimension_numbers = #tpu.dot_dimension_numbers<[1], [0], [0], [1], [0, 0, 1, 1], [], []>} : vector<128x128xbf16>, vector<128x128xbf16>, vector<128x128xf32> -> vector<128x128xf32>
    %c0_3 = arith.constant 0 : index
    %c0_4 = arith.constant 0 : index
    %3 = vector.load %arg3[%c0_3, %c0_4] : memref<128x128xf32, #tpu.memory_space<vmem>>, vector<128x128xf32>
    %cst_5 = arith.constant dense<0.000000e+00> : vector<128x128xf32>
    %4 = tpu.matmul %2, %3, %cst_5 {dimension_numbers = #tpu.dot_dimension_numbers<[1], [0], [0], [1], [0, 0, 1, 1], [], []>} : vector<128x128xf32>, vector<128x128xf32>, vector<128x128xf32> -> vector<128x128xf32>
    %c0_6 = arith.constant 0 : index
    %c0_7 = arith.constant 0 : index
    %5 = vector.load %arg4[%c0_6, %c0_7] : memref<1x128xf32, #tpu.memory_space<vmem>>, vector<1x128xf32>
    %6 = vector.broadcast %5 : vector<1x128xf32> to vector<128x128xf32>
    %7 = arith.addf %4, %6 : vector<128x128xf32>
    %cst_8 = arith.constant 0.000000e+00 : f32
    %8 = vector.broadcast %cst_8 : f32 to vector<128x128xf32>
    %9 = arith.maximumf %7, %8 : vector<128x128xf32>
    %c0_9 = arith.constant 0 : index
    %c0_10 = arith.constant 0 : index
    %10 = vector.load %arg5[%c0_9, %c0_10] : memref<128x128xf32, #tpu.memory_space<vmem>>, vector<128x128xf32>
    %cst_11 = arith.constant dense<0.000000e+00> : vector<128x128xf32>
    %11 = tpu.matmul %9, %10, %cst_11 {dimension_numbers = #tpu.dot_dimension_numbers<[1], [0], [0], [1], [0, 0, 1, 1], [], []>} : vector<128x128xf32>, vector<128x128xf32>, vector<128x128xf32> -> vector<128x128xf32>
    %c0_12 = arith.constant 0 : index
    %c0_13 = arith.constant 0 : index
    %12 = vector.load %arg1[%c0_12, %c0_13] : memref<128x128xbf16, #tpu.memory_space<vmem>>, vector<128x128xbf16>
    %13 = arith.truncf %11 : vector<128x128xf32> to vector<128x128xbf16>
    %cst_14 = arith.constant dense<0.000000e+00> : vector<128x128xf32>
    %14 = tpu.matmul %12, %13, %cst_14 {dimension_numbers = #tpu.dot_dimension_numbers<[1], [0], [0], [1], [0, 0, 1, 1], [], []>} : vector<128x128xbf16>, vector<128x128xbf16>, vector<128x128xf32> -> vector<128x128xf32>
    %c0_15 = arith.constant 0 : index
    %c0_16 = arith.constant 0 : index
    %15 = vector.load %arg6[%c0_15, %c0_16] : memref<1x128xf32, #tpu.memory_space<vmem>>, vector<1x128xf32>
    %16 = vector.broadcast %15 : vector<1x128xf32> to vector<128x128xf32>
    %17 = arith.addf %14, %16 : vector<128x128xf32>
    %c0_17 = arith.constant 0 : index
    %c0_18 = arith.constant 0 : index
    %18 = vector.load %arg7[%c0_17, %c0_18] : memref<128x128xf32, #tpu.memory_space<vmem>>, vector<128x128xf32>
    tpu.vector_store %arg7[%c0_17, %c0_18], %17 {strides = array<i32>} : memref<128x128xf32, #tpu.memory_space<vmem>>, vector<128x128xf32>,
    return
  }
  func.func @transform_0(%arg0: i32) -> (i32, i32) {
    %c0_i32 = arith.constant 0 : i32
    %c0_i32_0 = arith.constant 0 : i32
    %c0_i32_1 = arith.constant 0 : i32
    return %c0_i32, %c0_i32_0 : i32, i32
  }
  func.func @transform_1(%arg0: i32) -> (i32, i32) {
    %c0_i32 = arith.constant 0 : i32
    %c0_i32_0 = arith.constant 0 : i32
    %c0_i32_1 = arith.constant 0 : i32
    return %c0_i32, %c0_i32_0 : i32, i32
  }
  func.func @transform_2(%arg0: i32) -> (i32, i32) {
    %c0_i32 = arith.constant 0 : i32
    %c0_i32_0 = arith.constant 0 : i32
    %c0_i32_1 = arith.constant 0 : i32
    return %c0_i32, %c0_i32_0 : i32, i32
  }
  func.func @transform_3(%arg0: i32) -> (i32, i32) {
    %c0_i32 = arith.constant 0 : i32
    %c0_i32_0 = arith.constant 0 : i32
    %c0_i32_1 = arith.constant 0 : i32
    return %c0_i32, %c0_i32_0 : i32, i32
  }
  func.func @transform_4(%arg0: i32) -> (i32, i32) {
    %c0_i32 = arith.constant 0 : i32
    %c0_i32_0 = arith.constant 0 : i32
    %c0_i32_1 = arith.constant 0 : i32
    return %c0_i32, %c0_i32_0 : i32, i32
  }
  func.func @transform_5(%arg0: i32) -> (i32, i32) {
    %c0_i32 = arith.constant 0 : i32
    %c0_i32_0 = arith.constant 0 : i32
    %c0_i32_1 = arith.constant 0 : i32
    return %c0_i32, %c0_i32_0 : i32, i32
  }
  func.func @transform_6(%arg0: i32) -> (i32, i32) {
    %c0_i32 = arith.constant 0 : i32
    %c0_i32_0 = arith.constant 0 : i32
    %c0_i32_1 = arith.constant 0 : i32
    return %c0_i32, %c0_i32_0 : i32, i32
  }
}

</mosaic_0001>

<llo_original>
// kernel: mul.3
$region0: #{mul.3}
  #allocation0 [shape = 's32[1]{0}', space=sflag, size = 0x4, scoped, tag = 'scoped memory for mul.3']
  %s0 = inlined_call_operand.vmem [shape: f32[24], index: 0, kind: input, shape index: {}]
  %s1 = inlined_call_operand.vmem [shape: f32[24], index: 1, kind: input, shape index: {}]
  %s2 = inlined_call_operand.vmem [shape: f32[24], index: 2, kind: output, shape index: {}]
  %v3 = vld [vmem:[%s0] sm:$0x1]
  %v4 = vld [vmem:[%s1] sm:$0x1]
  %5 = xla_tuple %v3, %v4
  %6 = xla_tuple %5
  %v7 = vmul.f32 %v3, %v4
  %8 = xla_tuple %v7
  %9 = vst [vmem:[%s2] sm:$0x1] %v7

// kernel: gcn_forward.1
$region0: #{gcn_forward.1}
  #allocation0 [shape = 'u32[]', space=smem, size = 0x4, offset = 0x4, fixed_abs, tag = 'smem constant byte address 0x4 - core index']
  #allocation1 [shape = 'u32[144,128]{1,0:T(1,128)}', space=vmem, size = 0x12000, scoped, tag = 'internal scratch']
  %s0 = inlined_call_operand.vmem [shape: bf16[128,128], index: 0, kind: input, shape index: {}]
  %s1 = inlined_call_operand.vmem [shape: bf16[128,128], index: 1, kind: input, shape index: {}]
  %s2 = inlined_call_operand.vmem [shape: f32[128,128], index: 2, kind: input, shape index: {}]
  %s3 = inlined_call_operand.vmem [shape: f32[1,128], index: 3, kind: input, shape index: {}]
  %s4 = inlined_call_operand.vmem [shape: f32[128,128], index: 4, kind: input, shape index: {}]
  %s5 = inlined_call_operand.vmem [shape: f32[1,128], index: 5, kind: input, shape index: {}]
  %s6 = inlined_call_operand.vmem [shape: f32[128,128], index: 6, kind: output, shape index: {}]
  %s7 = sld [smem:[#allocation0]]
  $region34: #{gcn_forward.1} parent=0
    _
  %s9 = ssub.s32 1, %s7
  %s10 = scalar_select 0, %s9, %s7
  // Predicated region
  $region2: #{gcn_forward.1} parent=0 // pred_check
    _
  $region3: #{gcn_forward.1} parent=0 // pred_check_branch
    %12 = sbr.rel (0) target = $region5
  $region4: #{gcn_forward.1} parent=0 // pred_region
    _
  $region5: #{gcn_forward.1} parent=0 // pred_fallthru
    _
  // Predicated region
  $region6: #{gcn_forward.1} parent=0 // pred_check
    _
  $region7: #{gcn_forward.1} parent=0 // pred_check_branch
    %14 = sbr.rel (0) target = $region9
  $region8: #{gcn_forward.1} parent=0 // pred_region
    _
  $region9: #{gcn_forward.1} parent=0 // pred_fallthru
    _
  // Predicated region
  $region10: #{gcn_forward.1} parent=0 // pred_check
    _
  $region11: #{gcn_forward.1} parent=0 // pred_check_branch
    %16 = sbr.rel (0) target = $region13
  $region12: #{gcn_forward.1} parent=0 // pred_region
    _
  $region13: #{gcn_forward.1} parent=0 // pred_fallthru
    _
  // Predicated region
  $region14: #{gcn_forward.1} parent=0 // pred_check
    _
  $region15: #{gcn_forward.1} parent=0 // pred_check_branch
    %18 = sbr.rel (0) target = $region17
  $region16: #{gcn_forward.1} parent=0 // pred_region
    _
  $region17: #{gcn_forward.1} parent=0 // pred_fallthru
    _
  // Predicated region
  $region18: #{gcn_forward.1} parent=0 // pred_check
    _
  $region19: #{gcn_forward.1} parent=0 // pred_check_branch
    %20 = sbr.rel (0) target = $region21
  $region20: #{gcn_forward.1} parent=0 // pred_region
    _
  $region21: #{gcn_forward.1} parent=0 // pred_fallthru
    _
  // Predicated region
  $region22: #{gcn_forward.1} parent=0 // pred_check
    _
  $region23: #{gcn_forward.1} parent=0 // pred_check_branch
    %22 = sbr.rel (0) target = $region25
  $region24: #{gcn_forward.1} parent=0 // pred_region
    _
  $region25: #{gcn_forward.1} parent=0 // pred_fallthru
    _
  %v24 = vld [vmem:[%s0] sm:$0xf]
  %v25 = vld [vmem:[%s0 + $0x4] sm:$0xf]
  %v26 = vld [vmem:[%s0 + $0x8] sm:$0xf]
  %v27 = vld [vmem:[%s0 + $0xc] sm:$0xf]
  %v28 = vld [vmem:[%s0 + $0x10] sm:$0xf]
  %v29 = vld [vmem:[%s0 + $0x14] sm:$0xf]
  %v30 = vld [vmem:[%s0 + $0x18] sm:$0xf]
  %v31 = vld [vmem:[%s0 + $0x1c] sm:$0xf]
  %v32 = vld [vmem:[%s0 + $0x20] sm:$0xf]
  %v33 = vld [vmem:[%s0 + $0x24] sm:$0xf]
  %v34 = vld [vmem:[%s0 + $0x28] sm:$0xf]
  %v35 = vld [vmem:[%s0 + $0x2c] sm:$0xf]
  %v36 = vld [vmem:[%s0 + $0x30] sm:$0xf]
  %v37 = vld [vmem:[%s0 + $0x34] sm:$0xf]
  %v38 = vld [vmem:[%s0 + $0x38] sm:$0xf]
  %v39 = vld [vmem:[%s0 + $0x3c] sm:$0xf]
  %v40 = vld [vmem:[%s1] sm:$0xf]
  %v41 = vld [vmem:[%s1 + $0x4] sm:$0xf]
  %v42 = vld [vmem:[%s1 + $0x8] sm:$0xf]
  %v43 = vld [vmem:[%s1 + $0xc] sm:$0xf]
  %v44 = vld [vmem:[%s1 + $0x10] sm:$0xf]
  %v45 = vld [vmem:[%s1 + $0x14] sm:$0xf]
  %v46 = vld [vmem:[%s1 + $0x18] sm:$0xf]
  %v47 = vld [vmem:[%s1 + $0x1c] sm:$0xf]
  %v48 = vld [vmem:[%s1 + $0x20] sm:$0xf]
  %v49 = vld [vmem:[%s1 + $0x24] sm:$0xf]
  %v50 = vld [vmem:[%s1 + $0x28] sm:$0xf]
  %v51 = vld [vmem:[%s1 + $0x2c] sm:$0xf]
  %v52 = vld [vmem:[%s1 + $0x30] sm:$0xf]
  %v53 = vld [vmem:[%s1 + $0x34] sm:$0xf]
  %v54 = vld [vmem:[%s1 + $0x38] sm:$0xf]
  %v55 = vld [vmem:[%s1 + $0x3c] sm:$0xf]
  %v72 = vunpack.c.l.b16 %v24
  %v73 = vunpack.c.l.b16 %v25
  %v74 = vunpack.c.l.b16 %v26
  %v75 = vunpack.c.l.b16 %v27
  %v76 = vunpack.c.l.b16 %v28
  %v77 = vunpack.c.l.b16 %v29
  %v78 = vunpack.c.l.b16 %v30
  %v79 = vunpack.c.l.b16 %v31
  %v80 = vunpack.c.l.b16 %v32
  %v81 = vunpack.c.l.b16 %v33
  %v82 = vunpack.c.l.b16 %v34
  %v83 = vunpack.c.l.b16 %v35
  %v84 = vunpack.c.l.b16 %v36
  %v85 = vunpack.c.l.b16 %v37
  %v86 = vunpack.c.l.b16 %v38
  %v87 = vunpack.c.l.b16 %v39
  %v88 = vpack.c.b16 %v73, %v72
  %v89 = vpack.c.b16 %v75, %v74
  %v90 = vpack.c.b16 %v77, %v76
  %v91 = vpack.c.b16 %v79, %v78
  %v92 = vpack.c.b16 %v81, %v80
  %v93 = vpack.c.b16 %v83, %v82
  %v94 = vpack.c.b16 %v85, %v84
  %v95 = vpack.c.b16 %v87, %v86
  %v120 = vunpack.c.l.b16 %v40
  %v121 = vunpack.c.l.b16 %v41
  %v122 = vunpack.c.l.b16 %v42
  %v123 = vunpack.c.l.b16 %v43
  %v124 = vunpack.c.l.b16 %v44
  %v125 = vunpack.c.l.b16 %v45
  %v126 = vunpack.c.l.b16 %v46
  %v127 = vunpack.c.l.b16 %v47
  %v128 = vunpack.c.l.b16 %v48
  %v129 = vunpack.c.l.b16 %v49
  %v130 = vunpack.c.l.b16 %v50
  %v131 = vunpack.c.l.b16 %v51
  %v132 = vunpack.c.l.b16 %v52
  %v133 = vunpack.c.l.b16 %v53
  %v134 = vunpack.c.l.b16 %v54
  %v135 = vunpack.c.l.b16 %v55
  %v136 = vpack.c.b16 %v121, %v120
  %v137 = vpack.c.b16 %v123, %v122
  %v138 = vpack.c.b16 %v125, %v124
  %v139 = vpack.c.b16 %v127, %v126
  %v140 = vpack.c.b16 %v129, %v128
  %v141 = vpack.c.b16 %v131, %v130
  %v142 = vpack.c.b16 %v133, %v132
  %v143 = vpack.c.b16 %v135, %v134
  %152 = vmatprep.subr.bf16.mxu0 0
  %153 = vmatpush1.bf16.msra.mxu0 %v136
  %154 = vmatprep.subr.bf16.mxu0 0
  %155 = vmatpush1.bf16.msra.mxu0 %v137
  %156 = vmatprep.subr.bf16.mxu0 0
  %157 = vmatpush1.bf16.msra.mxu0 %v138
  %158 = vmatprep.subr.bf16.mxu0 0
  %159 = vmatpush1.bf16.msra.mxu0 %v139
  %160 = vmatprep.subr.bf16.mxu0 0
  %161 = vmatpush1.bf16.msra.mxu0 %v140
  %162 = vmatprep.subr.bf16.mxu0 0
  %163 = vmatpush1.bf16.msra.mxu0 %v141
  %164 = vmatprep.subr.bf16.mxu0 0
  %165 = vmatpush1.bf16.msra.mxu0 %v142
  %166 = vmatprep.subr.bf16.mxu0 0
  %167 = vmatpush1.bf16.msra.mxu0 %v143
  %168 = vmatprep.subr.bf16.mxu0 0
  %169 = vmatpush1.bf16.msra.mxu0 0
  %170 = vmatprep.subr.bf16.mxu0 0
  %171 = vmatpush1.bf16.msra.mxu0 0
  %172 = vmatprep.subr.bf16.mxu0 0
  %173 = vmatpush1.bf16.msra.mxu0 0
  %174 = vmatprep.subr.bf16.mxu0 0
  %175 = vmatpush1.bf16.msra.mxu0 0
  %176 = vmatprep.subr.bf16.mxu0 0
  %177 = vmatpush1.bf16.msra.mxu0 0
  %178 = vmatprep.subr.bf16.mxu0 0
  %179 = vmatpush1.bf16.msra.mxu0 0
  %180 = vmatprep.subr.bf16.mxu0 0
  %181 = vmatpush1.bf16.msra.mxu0 0
  %182 = vmatprep.subr.bf16.mxu0 0
  %183 = vmatpush1.bf16.msra.mxu0 0
  %184 = vmatprep.mubr.bf16.mxu0 0
  %185 = vmatmul.mubr.bf16.gmra.mrb[0].mxu0 %v88
  %v186 = vpop.f32.mrb[0].mxu0
  %v187 = vadd.f32 0.0, %v186
  %v188 = vpop.f32.mrb[0].mxu0
  %v189 = vpop.f32.mrb[0].mxu0
  %v190 = vadd.f32 0.0, %v189
  %v191 = vpop.f32.mrb[0].mxu0
  %192 = vmatprep.mubr.bf16.mxu0 0
  %193 = vmatmul.mubr.bf16.gmra.mrb[0].mxu0 %v89
  %v194 = vpop.f32.mrb[0].mxu0
  %v195 = vadd.f32 0.0, %v194
  %v196 = vpop.f32.mrb[0].mxu0
  %v197 = vpop.f32.mrb[0].mxu0
  %v198 = vadd.f32 0.0, %v197
  %v199 = vpop.f32.mrb[0].mxu0
  %200 = vmatprep.mubr.bf16.mxu0 0
  %201 = vmatmul.mubr.bf16.gmra.mrb[0].mxu0 %v90
  %v202 = vpop.f32.mrb[0].mxu0
  %v203 = vadd.f32 0.0, %v202
  %v204 = vpop.f32.mrb[0].mxu0
  %v205 = vpop.f32.mrb[0].mxu0
  %v206 = vadd.f32 0.0, %v205
  %v207 = vpop.f32.mrb[0].mxu0
  %208 = vmatprep.mubr.bf16.mxu0 0
  %209 = vmatmul.mubr.bf16.gmra.mrb[0].mxu0 %v91
  %v210 = vpop.f32.mrb[0].mxu0
  %v211 = vadd.f32 0.0, %v210
  %v212 = vpop.f32.mrb[0].mxu0
  %v213 = vpop.f32.mrb[0].mxu0
  %v214 = vadd.f32 0.0, %v213
  %v215 = vpop.f32.mrb[0].mxu0
  %216 = vmatprep.mubr.bf16.mxu0 0
  %217 = vmatmul.mubr.bf16.gmra.mrb[0].mxu0 %v92
  %v218 = vpop.f32.mrb[0].mxu0
  %v219 = vadd.f32 0.0, %v218
  %v220 = vpop.f32.mrb[0].mxu0
  %v221 = vpop.f32.mrb[0].mxu0
  %v222 = vadd.f32 0.0, %v221
  %v223 = vpop.f32.mrb[0].mxu0
  %224 = vmatprep.mubr.bf16.mxu0 0
  %225 = vmatmul.mubr.bf16.gmra.mrb[0].mxu0 %v93
  %v226 = vpop.f32.mrb[0].mxu0
  %v227 = vadd.f32 0.0, %v226
  %v228 = vpop.f32.mrb[0].mxu0
  %v229 = vpop.f32.mrb[0].mxu0
  %v230 = vadd.f32 0.0, %v229
  %v231 = vpop.f32.mrb[0].mxu0
  %232 = vmatprep.mubr.bf16.mxu0 0
  %233 = vmatmul.mubr.bf16.gmra.mrb[0].mxu0 %v94
  %v234 = vpop.f32.mrb[0].mxu0
  %v235 = vadd.f32 0.0, %v234
  %v236 = vpop.f32.mrb[0].mxu0
  %v237 = vpop.f32.mrb[0].mxu0
  %v238 = vadd.f32 0.0, %v237
  %v239 = vpop.f32.mrb[0].mxu0
  %240 = vmatprep.mubr.bf16.mxu0 0
  %241 = vmatmul.mubr.bf16.gmra.mrb[0].mxu0 %v95
  %v242 = vpop.f32.mrb[0].mxu0
  %v243 = vadd.f32 0.0, %v242
  %v244 = vpop.f32.mrb[0].mxu0
  %v245 = vpop.f32.mrb[0].mxu0
  %v246 = vadd.f32 0.0, %v245
  %v247 = vpop.f32.mrb[0].mxu0
  %248 = vdwg.mxu0
  %v249 = vld [vmem:[%s2] sm:$0xff]
  %v250 = vld [vmem:[%s2 + $0x8] sm:$0xff]
  %v251 = vld [vmem:[%s2 + $0x10] sm:$0xff]
  %v252 = vld [vmem:[%s2 + $0x18] sm:$0xff]
  %v253 = vld [vmem:[%s2 + $0x20] sm:$0xff]
  %v254 = vld [vmem:[%s2 + $0x28] sm:$0xff]
  %v255 = vld [vmem:[%s2 + $0x30] sm:$0xff]
  %v256 = vld [vmem:[%s2 + $0x38] sm:$0xff]
  %v257 = vld [vmem:[%s2 + $0x40] sm:$0xff]
  %v258 = vld [vmem:[%s2 + $0x48] sm:$0xff]
  %v259 = vld [vmem:[%s2 + $0x50] sm:$0xff]
  %v260 = vld [vmem:[%s2 + $0x58] sm:$0xff]
  %v261 = vld [vmem:[%s2 + $0x60] sm:$0xff]
  %v262 = vld [vmem:[%s2 + $0x68] sm:$0xff]
  %v263 = vld [vmem:[%s2 + $0x70] sm:$0xff]
  %v264 = vld [vmem:[%s2 + $0x78] sm:$0xff]
  %v265 = vld [vmem:[%s3] sm:$0x1]
  %v267 = vlaneseq
  %v268 = vshrl.u32 %v267, 7
  %v269 = vsub.s32 0, %v268
  %v270 = vrot.slane %v265, %v269
  %272 = vmatprep.subr.mxu0 0.0
  %273 = vmatpush1.msra.mxu0 %v249
  %274 = vmatprep.subr.mxu0 0.0
  %275 = vmatpush1.msra.mxu0 %v250
  %276 = vmatprep.subr.mxu0 0.0
  %277 = vmatpush1.msra.mxu0 %v251
  %278 = vmatprep.subr.mxu0 0.0
  %279 = vmatpush1.msra.mxu0 %v252
  %280 = vmatprep.subr.mxu0 0.0
  %281 = vmatpush1.msra.mxu0 %v253
  %282 = vmatprep.subr.mxu0 0.0
  %283 = vmatpush1.msra.mxu0 %v254
  %284 = vmatprep.subr.mxu0 0.0
  %285 = vmatpush1.msra.mxu0 %v255
  %286 = vmatprep.subr.mxu0 0.0
  %287 = vmatpush1.msra.mxu0 %v256
  %288 = vmatprep.subr.mxu0 0.0
  %289 = vmatpush1.msra.mxu0 %v257
  %290 = vmatprep.subr.mxu0 0.0
  %291 = vmatpush1.msra.mxu0 %v258
  %292 = vmatprep.subr.mxu0 0.0
  %293 = vmatpush1.msra.mxu0 %v259
  %294 = vmatprep.subr.mxu0 0.0
  %295 = vmatpush1.msra.mxu0 %v260
  %296 = vmatprep.subr.mxu0 0.0
  %297 = vmatpush1.msra.mxu0 %v261
  %298 = vmatprep.subr.mxu0 0.0
  %299 = vmatpush1.msra.mxu0 %v262
  %300 = vmatprep.subr.mxu0 0.0
  %301 = vmatpush1.msra.mxu0 %v263
  %302 = vmatprep.subr.mxu0 0.0
  %303 = vmatpush1.msra.mxu0 %v264
  %304 = vmatprep.subr.mxu0 0.0
  %305 = vmatpush1.msra.mxu0 0.0
  %306 = vmatprep.subr.mxu0 0.0
  %307 = vmatpush1.msra.mxu0 0.0
  %308 = vmatprep.subr.mxu0 0.0
  %309 = vmatpush1.msra.mxu0 0.0
  %310 = vmatprep.subr.mxu0 0.0
  %311 = vmatpush1.msra.mxu0 0.0
  %312 = vmatprep.subr.mxu0 0.0
  %313 = vmatpush1.msra.mxu0 0.0
  %314 = vmatprep.subr.mxu0 0.0
  %315 = vmatpush1.msra.mxu0 0.0
  %316 = vmatprep.subr.mxu0 0.0
  %317 = vmatpush1.msra.mxu0 0.0
  %318 = vmatprep.subr.mxu0 0.0
  %319 = vmatpush1.msra.mxu0 0.0
  %320 = vmatprep.subr.mxu0 0.0
  %321 = vmatpush1.msra.mxu0 0.0
  %322 = vmatprep.subr.mxu0 0.0
  %323 = vmatpush1.msra.mxu0 0.0
  %324 = vmatprep.subr.mxu0 0.0
  %325 = vmatpush1.msra.mxu0 0.0
  %326 = vmatprep.subr.mxu0 0.0
  %327 = vmatpush1.msra.mxu0 0.0
  %328 = vmatprep.subr.mxu0 0.0
  %329 = vmatpush1.msra.mxu0 0.0
  %330 = vmatprep.subr.mxu0 0.0
  %331 = vmatpush1.msra.mxu0 0.0
  %332 = vmatprep.subr.mxu0 0.0
  %333 = vmatpush1.msra.mxu0 0.0
  %334 = vmatprep.subr.mxu0 0.0
  %335 = vmatpush1.msra.mxu0 0.0
  %336 = vmatprep.mubr.f32.mxu0 0.0
  %337 = vmatmul.mubr.f32.gmra.mrb[0].mxu0 %v187
  %v338 = vpop.f32.mrb[0].mxu0
  %v339 = vadd.f32 %v270, %v338
  %v340 = vpop.f32.mrb[0].mxu0
  %341 = vmatprep.mubr.f32.mxu0 0.0
  %342 = vmatmul.mubr.f32.gmra.mrb[0].mxu0 %v190
  %v343 = vpop.f32.mrb[0].mxu0
  %v344 = vadd.f32 %v270, %v343
  %v345 = vpop.f32.mrb[0].mxu0
  %346 = vmatprep.mubr.f32.mxu0 0.0
  %347 = vmatmul.mubr.f32.gmra.mrb[0].mxu0 %v195
  %v348 = vpop.f32.mrb[0].mxu0
  %v349 = vadd.f32 %v270, %v348
  %v350 = vpop.f32.mrb[0].mxu0
  %351 = vmatprep.mubr.f32.mxu0 0.0
  %352 = vmatmul.mubr.f32.gmra.mrb[0].mxu0 %v198
  %v353 = vpop.f32.mrb[0].mxu0
  %v354 = vadd.f32 %v270, %v353
  %v355 = vpop.f32.mrb[0].mxu0
  %356 = vmatprep.mubr.f32.mxu0 0.0
  %357 = vmatmul.mubr.f32.gmra.mrb[0].mxu0 %v203
  %v358 = vpop.f32.mrb[0].mxu0
  %v359 = vadd.f32 %v270, %v358
  %v360 = vpop.f32.mrb[0].mxu0
  %361 = vmatprep.mubr.f32.mxu0 0.0
  %362 = vmatmul.mubr.f32.gmra.mrb[0].mxu0 %v206
  %v363 = vpop.f32.mrb[0].mxu0
  %v364 = vadd.f32 %v270, %v363
  %v365 = vpop.f32.mrb[0].mxu0
  %366 = vmatprep.mubr.f32.mxu0 0.0
  %367 = vmatmul.mubr.f32.gmra.mrb[0].mxu0 %v211
  %v368 = vpop.f32.mrb[0].mxu0
  %v369 = vadd.f32 %v270, %v368
  %v370 = vpop.f32.mrb[0].mxu0
  %371 = vmatprep.mubr.f32.mxu0 0.0
  %372 = vmatmul.mubr.f32.gmra.mrb[0].mxu0 %v214
  %v373 = vpop.f32.mrb[0].mxu0
  %v374 = vadd.f32 %v270, %v373
  %v375 = vpop.f32.mrb[0].mxu0
  %376 = vmatprep.mubr.f32.mxu0 0.0
  %377 = vmatmul.mubr.f32.gmra.mrb[0].mxu0 %v219
  %v378 = vpop.f32.mrb[0].mxu0
  %v379 = vadd.f32 %v270, %v378
  %v380 = vpop.f32.mrb[0].mxu0
  %381 = vmatprep.mubr.f32.mxu0 0.0
  %382 = vmatmul.mubr.f32.gmra.mrb[0].mxu0 %v222
  %v383 = vpop.f32.mrb[0].mxu0
  %v384 = vadd.f32 %v270, %v383
  %v385 = vpop.f32.mrb[0].mxu0
  %386 = vmatprep.mubr.f32.mxu0 0.0
  %387 = vmatmul.mubr.f32.gmra.mrb[0].mxu0 %v227
  %v388 = vpop.f32.mrb[0].mxu0
  %v389 = vadd.f32 %v270, %v388
  %v390 = vpop.f32.mrb[0].mxu0
  %391 = vmatprep.mubr.f32.mxu0 0.0
  %392 = vmatmul.mubr.f32.gmra.mrb[0].mxu0 %v230
  %v393 = vpop.f32.mrb[0].mxu0
  %v394 = vadd.f32 %v270, %v393
  %v395 = vpop.f32.mrb[0].mxu0
  %396 = vmatprep.mubr.f32.mxu0 0.0
  %397 = vmatmul.mubr.f32.gmra.mrb[0].mxu0 %v235
  %v398 = vpop.f32.mrb[0].mxu0
  %v399 = vadd.f32 %v270, %v398
  %v400 = vpop.f32.mrb[0].mxu0
  %401 = vmatprep.mubr.f32.mxu0 0.0
  %402 = vmatmul.mubr.f32.gmra.mrb[0].mxu0 %v238
  %v403 = vpop.f32.mrb[0].mxu0
  %v404 = vadd.f32 %v270, %v403
  %v405 = vpop.f32.mrb[0].mxu0
  %406 = vmatprep.mubr.f32.mxu0 0.0
  %407 = vmatmul.mubr.f32.gmra.mrb[0].mxu0 %v243
  %v408 = vpop.f32.mrb[0].mxu0
  %v409 = vadd.f32 %v270, %v408
  %v410 = vpop.f32.mrb[0].mxu0
  %411 = vmatprep.mubr.f32.mxu0 0.0
  %412 = vmatmul.mubr.f32.gmra.mrb[0].mxu0 %v246
  %v413 = vpop.f32.mrb[0].mxu0
  %v414 = vadd.f32 %v270, %v413
  %v415 = vpop.f32.mrb[0].mxu0
  %416 = vdwg.mxu0
  %v417 = vmax.f32 %v339, 0.0
  %v418 = vmax.f32 %v344, 0.0
  %v419 = vmax.f32 %v349, 0.0
  %v420 = vmax.f32 %v354, 0.0
  %v421 = vmax.f32 %v359, 0.0
  %v422 = vmax.f32 %v364, 0.0
  %v423 = vmax.f32 %v369, 0.0
  %v424 = vmax.f32 %v374, 0.0
  %v425 = vmax.f32 %v379, 0.0
  %v426 = vmax.f32 %v384, 0.0
  %v427 = vmax.f32 %v389, 0.0
  %v428 = vmax.f32 %v394, 0.0
  %v429 = vmax.f32 %v399, 0.0
  %v430 = vmax.f32 %v404, 0.0
  %v431 = vmax.f32 %v409, 0.0
  %v432 = vmax.f32 %v414, 0.0
  %v433 = vld [vmem:[%s4] sm:$0xff]
  %v434 = vld [vmem:[%s4 + $0x8] sm:$0xff]
  %v435 = vld [vmem:[%s4 + $0x10] sm:$0xff]
  %v436 = vld [vmem:[%s4 + $0x18] sm:$0xff]
  %v437 = vld [vmem:[%s4 + $0x20] sm:$0xff]
  %v438 = vld [vmem:[%s4 + $0x28] sm:$0xff]
  %v439 = vld [vmem:[%s4 + $0x30] sm:$0xff]
  %v440 = vld [vmem:[%s4 + $0x38] sm:$0xff]
  %v441 = vld [vmem:[%s4 + $0x40] sm:$0xff]
  %v442 = vld [vmem:[%s4 + $0x48] sm:$0xff]
  %v443 = vld [vmem:[%s4 + $0x50] sm:$0xff]
  %v444 = vld [vmem:[%s4 + $0x58] sm:$0xff]
  %v445 = vld [vmem:[%s4 + $0x60] sm:$0xff]
  %v446 = vld [vmem:[%s4 + $0x68] sm:$0xff]
  %v447 = vld [vmem:[%s4 + $0x70] sm:$0xff]
  %v448 = vld [vmem:[%s4 + $0x78] sm:$0xff]
  %449 = vmatprep.subr.mxu0 0.0
  %450 = vmatpush1.msra.mxu0 %v433
  %451 = vmatprep.subr.mxu0 0.0
  %452 = vmatpush1.msra.mxu0 %v434
  %453 = vmatprep.subr.mxu0 0.0
  %454 = vmatpush1.msra.mxu0 %v435
  %455 = vmatprep.subr.mxu0 0.0
  %456 = vmatpush1.msra.mxu0 %v436
  %457 = vmatprep.subr.mxu0 0.0
  %458 = vmatpush1.msra.mxu0 %v437
  %459 = vmatprep.subr.mxu0 0.0
  %460 = vmatpush1.msra.mxu0 %v438
  %461 = vmatprep.subr.mxu0 0.0
  %462 = vmatpush1.msra.mxu0 %v439
  %463 = vmatprep.subr.mxu0 0.0
  %464 = vmatpush1.msra.mxu0 %v440
  %465 = vmatprep.subr.mxu0 0.0
  %466 = vmatpush1.msra.mxu0 %v441
  %467 = vmatprep.subr.mxu0 0.0
  %468 = vmatpush1.msra.mxu0 %v442
  %469 = vmatprep.subr.mxu0 0.0
  %470 = vmatpush1.msra.mxu0 %v443
  %471 = vmatprep.subr.mxu0 0.0
  %472 = vmatpush1.msra.mxu0 %v444
  %473 = vmatprep.subr.mxu0 0.0
  %474 = vmatpush1.msra.mxu0 %v445
  %475 = vmatprep.subr.mxu0 0.0
  %476 = vmatpush1.msra.mxu0 %v446
  %477 = vmatprep.subr.mxu0 0.0
  %478 = vmatpush1.msra.mxu0 %v447
  %479 = vmatprep.subr.mxu0 0.0
  %480 = vmatpush1.msra.mxu0 %v448
  %481 = vmatprep.subr.mxu0 0.0
  %482 = vmatpush1.msra.mxu0 0.0
  %483 = vmatprep.subr.mxu0 0.0
  %484 = vmatpush1.msra.mxu0 0.0
  %485 = vmatprep.subr.mxu0 0.0
  %486 = vmatpush1.msra.mxu0 0.0
  %487 = vmatprep.subr.mxu0 0.0
  %488 = vmatpush1.msra.mxu0 0.0
  %489 = vmatprep.subr.mxu0 0.0
  %490 = vmatpush1.msra.mxu0 0.0
  %491 = vmatprep.subr.mxu0 0.0
  %492 = vmatpush1.msra.mxu0 0.0
  %493 = vmatprep.subr.mxu0 0.0
  %494 = vmatpush1.msra.mxu0 0.0
  %495 = vmatprep.subr.mxu0 0.0
  %496 = vmatpush1.msra.mxu0 0.0
  %497 = vmatprep.subr.mxu0 0.0
  %498 = vmatpush1.msra.mxu0 0.0
  %499 = vmatprep.subr.mxu0 0.0
  %500 = vmatpush1.msra.mxu0 0.0
  %501 = vmatprep.subr.mxu0 0.0
  %502 = vmatpush1.msra.mxu0 0.0
  %503 = vmatprep.subr.mxu0 0.0
  %504 = vmatpush1.msra.mxu0 0.0
  %505 = vmatprep.subr.mxu0 0.0
  %506 = vmatpush1.msra.mxu0 0.0
  %507 = vmatprep.subr.mxu0 0.0
  %508 = vmatpush1.msra.mxu0 0.0
  %509 = vmatprep.subr.mxu0 0.0
  %510 = vmatpush1.msra.mxu0 0.0
  %511 = vmatprep.subr.mxu0 0.0
  %512 = vmatpush1.msra.mxu0 0.0
  %513 = vmatprep.mubr.f32.mxu0 0.0
  %514 = vmatmul.mubr.f32.gmra.mrb[0].mxu0 %v417
  %v515 = vpop.f32.mrb[0].mxu0
  %v516 = vadd.f32 0.0, %v515
  %v517 = vpop.f32.mrb[0].mxu0
  %518 = vmatprep.mubr.f32.mxu0 0.0
  %519 = vmatmul.mubr.f32.gmra.mrb[0].mxu0 %v418
  %v520 = vpop.f32.mrb[0].mxu0
  %v521 = vadd.f32 0.0, %v520
  %v522 = vpop.f32.mrb[0].mxu0
  %523 = vmatprep.mubr.f32.mxu0 0.0
  %524 = vmatmul.mubr.f32.gmra.mrb[0].mxu0 %v419
  %v525 = vpop.f32.mrb[0].mxu0
  %v526 = vadd.f32 0.0, %v525
  %v527 = vpop.f32.mrb[0].mxu0
  %528 = vmatprep.mubr.f32.mxu0 0.0
  %529 = vmatmul.mubr.f32.gmra.mrb[0].mxu0 %v420
  %v530 = vpop.f32.mrb[0].mxu0
  %v531 = vadd.f32 0.0, %v530
  %v532 = vpop.f32.mrb[0].mxu0
  %533 = vmatprep.mubr.f32.mxu0 0.0
  %534 = vmatmul.mubr.f32.gmra.mrb[0].mxu0 %v421
  %v535 = vpop.f32.mrb[0].mxu0
  %v536 = vadd.f32 0.0, %v535
  %v537 = vpop.f32.mrb[0].mxu0
  %538 = vmatprep.mubr.f32.mxu0 0.0
  %539 = vmatmul.mubr.f32.gmra.mrb[0].mxu0 %v422
  %v540 = vpop.f32.mrb[0].mxu0
  %v541 = vadd.f32 0.0, %v540
  %v542 = vpop.f32.mrb[0].mxu0
  %543 = vmatprep.mubr.f32.mxu0 0.0
  %544 = vmatmul.mubr.f32.gmra.mrb[0].mxu0 %v423
  %v545 = vpop.f32.mrb[0].mxu0
  %v546 = vadd.f32 0.0, %v545
  %v547 = vpop.f32.mrb[0].mxu0
  %548 = vmatprep.mubr.f32.mxu0 0.0
  %549 = vmatmul.mubr.f32.gmra.mrb[0].mxu0 %v424
  %v550 = vpop.f32.mrb[0].mxu0
  %v551 = vadd.f32 0.0, %v550
  %v552 = vpop.f32.mrb[0].mxu0
  %553 = vmatprep.mubr.f32.mxu0 0.0
  %554 = vmatmul.mubr.f32.gmra.mrb[0].mxu0 %v425
  %v555 = vpop.f32.mrb[0].mxu0
  %v556 = vadd.f32 0.0, %v555
  %v557 = vpop.f32.mrb[0].mxu0
  %558 = vmatprep.mubr.f32.mxu0 0.0
  %559 = vmatmul.mubr.f32.gmra.mrb[0].mxu0 %v426
  %v560 = vpop.f32.mrb[0].mxu0
  %v561 = vadd.f32 0.0, %v560
  %v562 = vpop.f32.mrb[0].mxu0
  %563 = vmatprep.mubr.f32.mxu0 0.0
  %564 = vmatmul.mubr.f32.gmra.mrb[0].mxu0 %v427
  %v565 = vpop.f32.mrb[0].mxu0
  %v566 = vadd.f32 0.0, %v565
  %v567 = vpop.f32.mrb[0].mxu0
  %568 = vmatprep.mubr.f32.mxu0 0.0
  %569 = vmatmul.mubr.f32.gmra.mrb[0].mxu0 %v428
  %v570 = vpop.f32.mrb[0].mxu0
  %v571 = vadd.f32 0.0, %v570
  %v572 = vpop.f32.mrb[0].mxu0
  %573 = vmatprep.mubr.f32.mxu0 0.0
  %574 = vmatmul.mubr.f32.gmra.mrb[0].mxu0 %v429
  %v575 = vpop.f32.mrb[0].mxu0
  %v576 = vadd.f32 0.0, %v575
  %v577 = vpop.f32.mrb[0].mxu0
  %578 = vmatprep.mubr.f32.mxu0 0.0
  %579 = vmatmul.mubr.f32.gmra.mrb[0].mxu0 %v430
  %v580 = vpop.f32.mrb[0].mxu0
  %v581 = vadd.f32 0.0, %v580
  %v582 = vpop.f32.mrb[0].mxu0
  %583 = vmatprep.mubr.f32.mxu0 0.0
  %584 = vmatmul.mubr.f32.gmra.mrb[0].mxu0 %v431
  %v585 = vpop.f32.mrb[0].mxu0
  %v586 = vadd.f32 0.0, %v585
  %v587 = vpop.f32.mrb[0].mxu0
  %588 = vmatprep.mubr.f32.mxu0 0.0
  %589 = vmatmul.mubr.f32.gmra.mrb[0].mxu0 %v432
  %v590 = vpop.f32.mrb[0].mxu0
  %v591 = vadd.f32 0.0, %v590
  %v592 = vpop.f32.mrb[0].mxu0
  %593 = vdwg.mxu0
  %v594 = vpack.c.bf16 %v521, %v516
  %v595 = vpack.c.bf16 %v531, %v526
  %v596 = vpack.c.bf16 %v541, %v536
  %v597 = vpack.c.bf16 %v551, %v546
  %v598 = vpack.c.bf16 %v561, %v556
  %v599 = vpack.c.bf16 %v571, %v566
  %v600 = vpack.c.bf16 %v581, %v576
  %v601 = vpack.c.bf16 %v591, %v586
  %v602 = vld [vmem:[%s5] sm:$0x1]
  %v604 = vlaneseq
  %v605 = vshrl.u32 %v604, 7
  %v606 = vsub.s32 0, %v605
  %v607 = vrot.slane %v602, %v606
  %609 = vmatprep.subr.bf16.mxu0 0
  %610 = vmatpush1.bf16.msra.mxu0 %v594
  %611 = vmatprep.subr.bf16.mxu0 0
  %612 = vmatpush1.bf16.msra.mxu0 %v595
  %613 = vmatprep.subr.bf16.mxu0 0
  %614 = vmatpush1.bf16.msra.mxu0 %v596
  %615 = vmatprep.subr.bf16.mxu0 0
  %616 = vmatpush1.bf16.msra.mxu0 %v597
  %617 = vmatprep.subr.bf16.mxu0 0
  %618 = vmatpush1.bf16.msra.mxu0 %v598
  %619 = vmatprep.subr.bf16.mxu0 0
  %620 = vmatpush1.bf16.msra.mxu0 %v599
  %621 = vmatprep.subr.bf16.mxu0 0
  %622 = vmatpush1.bf16.msra.mxu0 %v600
  %623 = vmatprep.subr.bf16.mxu0 0
  %624 = vmatpush1.bf16.msra.mxu0 %v601
  %625 = vmatprep.subr.bf16.mxu0 0
  %626 = vmatpush1.bf16.msra.mxu0 0
  %627 = vmatprep.subr.bf16.mxu0 0
  %628 = vmatpush1.bf16.msra.mxu0 0
  %629 = vmatprep.subr.bf16.mxu0 0
  %630 = vmatpush1.bf16.msra.mxu0 0
  %631 = vmatprep.subr.bf16.mxu0 0
  %632 = vmatpush1.bf16.msra.mxu0 0
  %633 = vmatprep.subr.bf16.mxu0 0
  %634 = vmatpush1.bf16.msra.mxu0 0
  %635 = vmatprep.subr.bf16.mxu0 0
  %636 = vmatpush1.bf16.msra.mxu0 0
  %637 = vmatprep.subr.bf16.mxu0 0
  %638 = vmatpush1.bf16.msra.mxu0 0
  %639 = vmatprep.subr.bf16.mxu0 0
  %640 = vmatpush1.bf16.msra.mxu0 0
  %641 = vmatprep.mubr.bf16.mxu0 0
  %642 = vmatmul.mubr.bf16.gmra.mrb[0].mxu0 %v88
  %v643 = vpop.f32.mrb[0].mxu0
  %v644 = vadd.f32 %v607, %v643
  %v645 = vpop.f32.mrb[0].mxu0
  %v646 = vpop.f32.mrb[0].mxu0
  %v647 = vadd.f32 %v607, %v646
  %v648 = vpop.f32.mrb[0].mxu0
  %649 = vmatprep.mubr.bf16.mxu0 0
  %650 = vmatmul.mubr.bf16.gmra.mrb[0].mxu0 %v89
  %v651 = vpop.f32.mrb[0].mxu0
  %v652 = vadd.f32 %v607, %v651
  %v653 = vpop.f32.mrb[0].mxu0
  %v654 = vpop.f32.mrb[0].mxu0
  %v655 = vadd.f32 %v607, %v654
  %v656 = vpop.f32.mrb[0].mxu0
  %657 = vmatprep.mubr.bf16.mxu0 0
  %658 = vmatmul.mubr.bf16.gmra.mrb[0].mxu0 %v90
  %v659 = vpop.f32.mrb[0].mxu0
  %v660 = vadd.f32 %v607, %v659
  %v661 = vpop.f32.mrb[0].mxu0
  %v662 = vpop.f32.mrb[0].mxu0
  %v663 = vadd.f32 %v607, %v662
  %v664 = vpop.f32.mrb[0].mxu0
  %665 = vmatprep.mubr.bf16.mxu0 0
  %666 = vmatmul.mubr.bf16.gmra.mrb[0].mxu0 %v91
  %v667 = vpop.f32.mrb[0].mxu0
  %v668 = vadd.f32 %v607, %v667
  %v669 = vpop.f32.mrb[0].mxu0
  %v670 = vpop.f32.mrb[0].mxu0
  %v671 = vadd.f32 %v607, %v670
  %v672 = vpop.f32.mrb[0].mxu0
  %673 = vmatprep.mubr.bf16.mxu0 0
  %674 = vmatmul.mubr.bf16.gmra.mrb[0].mxu0 %v92
  %v675 = vpop.f32.mrb[0].mxu0
  %v676 = vadd.f32 %v607, %v675
  %v677 = vpop.f32.mrb[0].mxu0
  %v678 = vpop.f32.mrb[0].mxu0
  %v679 = vadd.f32 %v607, %v678
  %v680 = vpop.f32.mrb[0].mxu0
  %681 = vmatprep.mubr.bf16.mxu0 0
  %682 = vmatmul.mubr.bf16.gmra.mrb[0].mxu0 %v93
  %v683 = vpop.f32.mrb[0].mxu0
  %v684 = vadd.f32 %v607, %v683
  %v685 = vpop.f32.mrb[0].mxu0
  %v686 = vpop.f32.mrb[0].mxu0
  %v687 = vadd.f32 %v607, %v686
  %v688 = vpop.f32.mrb[0].mxu0
  %689 = vmatprep.mubr.bf16.mxu0 0
  %690 = vmatmul.mubr.bf16.gmra.mrb[0].mxu0 %v94
  %v691 = vpop.f32.mrb[0].mxu0
  %v692 = vadd.f32 %v607, %v691
  %v693 = vpop.f32.mrb[0].mxu0
  %v694 = vpop.f32.mrb[0].mxu0
  %v695 = vadd.f32 %v607, %v694
  %v696 = vpop.f32.mrb[0].mxu0
  %697 = vmatprep.mubr.bf16.mxu0 0
  %698 = vmatmul.mubr.bf16.gmra.mrb[0].mxu0 %v95
  %v699 = vpop.f32.mrb[0].mxu0
  %v700 = vadd.f32 %v607, %v699
  %v701 = vpop.f32.mrb[0].mxu0
  %v702 = vpop.f32.mrb[0].mxu0
  %v703 = vadd.f32 %v607, %v702
  %v704 = vpop.f32.mrb[0].mxu0
  %705 = vdwg.mxu0
  %706 = vst [vmem:[%s6] sm:$0xff] %v644
  %707 = vst [vmem:[%s6 + $0x8] sm:$0xff] %v647
  %708 = vst [vmem:[%s6 + $0x10] sm:$0xff] %v652
  %709 = vst [vmem:[%s6 + $0x18] sm:$0xff] %v655
  %710 = vst [vmem:[%s6 + $0x20] sm:$0xff] %v660
  %711 = vst [vmem:[%s6 + $0x28] sm:$0xff] %v663
  %712 = vst [vmem:[%s6 + $0x30] sm:$0xff] %v668
  %713 = vst [vmem:[%s6 + $0x38] sm:$0xff] %v671
  %714 = vst [vmem:[%s6 + $0x40] sm:$0xff] %v676
  %715 = vst [vmem:[%s6 + $0x48] sm:$0xff] %v679
  %716 = vst [vmem:[%s6 + $0x50] sm:$0xff] %v684
  %717 = vst [vmem:[%s6 + $0x58] sm:$0xff] %v687
  %718 = vst [vmem:[%s6 + $0x60] sm:$0xff] %v692
  %719 = vst [vmem:[%s6 + $0x68] sm:$0xff] %v695
  %720 = vst [vmem:[%s6 + $0x70] sm:$0xff] %v700
  %721 = vst [vmem:[%s6 + $0x78] sm:$0xff] %v703
  // Predicated region
  $region26: #{gcn_forward.1} parent=0 // pred_check
    _
  $region27: #{gcn_forward.1} parent=0 // pred_check_branch
    %723 = sbr.rel (0) target = $region29
  $region28: #{gcn_forward.1} parent=0 // pred_region
    _
  $region29: #{gcn_forward.1} parent=0 // pred_fallthru
    _
  // Predicated region
  $region30: #{gcn_forward.1} parent=0 // pred_check
    _
  $region31: #{gcn_forward.1} parent=0 // pred_check_branch
    %725 = sbr.rel (0) target = $region33
  $region32: #{gcn_forward.1} parent=0 // pred_region
    _
  $region33: #{gcn_forward.1} parent=0 // pred_fallthru
    _

</llo_original>
